<compile_context>
chip_gen: v7x
topology: tpu7x:2x2x1
jax: 0.10.0
libtpu: 0.0.40
codegen_flags: <defaults>
</compile_context>

<pallas_src>
import math
from functools import partial

import numpy as np
import jax
import jax.numpy as jnp
from jax.experimental import pallas as pl
from jax.experimental.pallas import tpu as pltpu

W_DTYPE = jnp.bfloat16           # MXU operand / weight storage dtype
ROW_BLOCK = 256                  # row tile for the flattened (B*N, D) kernels

_CP = getattr(pltpu, "CompilerParams", None)


def _params(*sems):
    if _CP is None:
        return None
    return _CP(dimension_semantics=tuple(sems))


def _row_tiles(M):
    """(block_m, grid_m): full array when small, 256-row tiles otherwise."""
    if M <= ROW_BLOCK:
        return M, 1
    return ROW_BLOCK, pl.cdiv(M, ROW_BLOCK)


def _recip(x):
    if hasattr(pl, "reciprocal"):
        return pl.reciprocal(x, approx=True)
    return 1.0 / x


# --------------------------- in-kernel math helpers --------------------------

def _ln_f32(x, g, b, eps):
    mu = jnp.mean(x, axis=-1, keepdims=True)
    var = jnp.mean((x - mu) ** 2, axis=-1, keepdims=True)
    return (x - mu) * jax.lax.rsqrt(var + eps) * g + b


def _erf(x):
    # Abramowitz & Stegun 7.1.26 (|err| < 1.5e-7): exact-GELU fidelity without
    # relying on a Mosaic lowering for lax.erf (exp / poly only).
    a1, a2, a3, a4, a5 = 0.254829592, -0.284496736, 1.421413741, -1.453152027, 1.061405429
    pc = 0.3275911
    ax = jnp.abs(x)
    t = 1.0 / (1.0 + pc * ax)
    poly = ((((a5 * t + a4) * t + a3) * t + a2) * t + a1) * t
    y = 1.0 - poly * jnp.exp(-ax * ax)
    return jnp.where(x >= 0, y, -y)


def _gelu(x):
    # nn.GELU default (exact, erf-based)
    return 0.5 * x * (1.0 + _erf(x * 0.7071067811865475))


# ------------------------------- Pallas kernels ------------------------------

def _linear_kernel(x_ref, w_ref, b_ref, o_ref):
    y = jnp.dot(x_ref[...].astype(w_ref.dtype), w_ref[...],
                preferred_element_type=jnp.float32)
    o_ref[...] = (y + b_ref[...]).astype(o_ref.dtype)


def _ln_kernel(x_ref, g_ref, b_ref, o_ref, *, eps):
    o_ref[...] = _ln_f32(x_ref[...].astype(jnp.float32),
                         g_ref[...], b_ref[...], eps).astype(o_ref.dtype)


def _ln_linear_kernel(x_ref, g_ref, b_ref, w_ref, bias_ref, o_ref, *, eps):
    h = _ln_f32(x_ref[...].astype(jnp.float32), g_ref[...], b_ref[...], eps)
    y = jnp.dot(h.astype(w_ref.dtype), w_ref[...],
                preferred_element_type=jnp.float32)
    o_ref[...] = (y + bias_ref[...]).astype(o_ref.dtype)


def _ln_mlp_res_kernel(x_ref, g_ref, b_ref, w1_ref, b1_ref, w2_ref, b2_ref, o_ref, *, eps):
    x = x_ref[...].astype(jnp.float32)
    h = _ln_f32(x, g_ref[...], b_ref[...], eps)
    h = jnp.dot(h.astype(w1_ref.dtype), w1_ref[...],
                preferred_element_type=jnp.float32) + b1_ref[...]
    h = _gelu(h)
    h = jnp.dot(h.astype(w2_ref.dtype), w2_ref[...],
                preferred_element_type=jnp.float32) + b2_ref[...]
    o_ref[...] = (x + h).astype(o_ref.dtype)


def _mlp_kernel(x_ref, w1_ref, b1_ref, w2_ref, b2_ref, o_ref):
    h = jnp.dot(x_ref[...].astype(w1_ref.dtype), w1_ref[...],
                preferred_element_type=jnp.float32) + b1_ref[...]
    h = _gelu(h)
    h = jnp.dot(h.astype(w2_ref.dtype), w2_ref[...],
                preferred_element_type=jnp.float32) + b2_ref[...]
    o_ref[...] = h.astype(o_ref.dtype)


def _patch_embed_kernel(x_ref, w_ref, b_ref, pe_ref, o_ref):
    y = jnp.dot(x_ref[0].astype(w_ref.dtype), w_ref[...],
                preferred_element_type=jnp.float32)
    o_ref[0] = (y + b_ref[...] + pe_ref[...]).astype(o_ref.dtype)


def _attn_block_kernel(x_ref, g_ref, b_ref, qkvw_ref, qkvb_ref, pw_ref, pb_ref,
                       o_ref, *, num_heads, scale, eps):
    """LN1 -> qkv matmul -> all-heads attention -> out-proj -> residual add."""
    x = x_ref[0].astype(jnp.float32)                # (N, D) residual stream
    h = _ln_f32(x, g_ref[...], b_ref[...], eps)
    qkv = jnp.dot(h.astype(qkvw_ref.dtype), qkvw_ref[...],
                  preferred_element_type=jnp.float32) + qkvb_ref[...]
    qkv = qkv.astype(W_DTYPE)                       # (N, 3D) bf16 MXU operands
    D = x.shape[-1]
    Dh = D // num_heads
    heads = []
    for hh in range(num_heads):                     # static loop: all heads this step
        q = qkv[:, hh * Dh:(hh + 1) * Dh]
        k = qkv[:, D + hh * Dh:D + (hh + 1) * Dh]
        v = qkv[:, 2 * D + hh * Dh:2 * D + (hh + 1) * Dh]
        s = jax.lax.dot_general(q, k, (((1,), (1,)), ((), ())),
                                preferred_element_type=jnp.float32) * scale
        s = s - jnp.max(s, axis=-1, keepdims=True)
        p = jnp.exp(s)
        p = p * _recip(jnp.sum(p, axis=-1, keepdims=True))
        heads.append(jnp.dot(p.astype(v.dtype), v,
                             preferred_element_type=jnp.float32))
    attn = jnp.concatenate(heads, axis=-1)          # (N, D) lane-dense
    y = jnp.dot(attn.astype(pw_ref.dtype), pw_ref[...],
                preferred_element_type=jnp.float32)
    o_ref[0] = (x + y + pb_ref[...]).astype(o_ref.dtype)


def _masked_mse_kernel(p_ref, t_ref, m_ref, num_ref, den_ref, *, block_m, n_rows):
    i = pl.program_id(0)

    @pl.when(i == 0)
    def _():
        num_ref[...] = jnp.zeros_like(num_ref)
        den_ref[...] = jnp.zeros_like(den_ref)

    d = p_ref[...].astype(jnp.float32) - t_ref[...].astype(jnp.float32)
    row_mse = jnp.mean(d * d, axis=-1, keepdims=True)          # (bm, 1)
    m = m_ref[...].astype(jnp.float32)                         # (bm, 1)
    rid = i * block_m + jax.lax.broadcasted_iota(jnp.int32, row_mse.shape, 0)
    valid = rid < n_rows                                       # mask padded tail rows
    num_ref[...] += jnp.sum(jnp.where(valid, row_mse * m, 0.0), axis=0, keepdims=True)
    den_ref[...] += jnp.sum(jnp.where(valid, m, 0.0), axis=0, keepdims=True)


# ------------------------------ kernel wrappers -------------------------------

def pallas_linear(x2, w, b, out_dtype=jnp.float32):
    M, K = x2.shape
    N = w.shape[1]
    bm, gm = _row_tiles(M)
    return pl.pallas_call(
        _linear_kernel,
        grid=(gm,),
        in_specs=[pl.BlockSpec((bm, K), lambda i: (i, 0)),
                  pl.BlockSpec((K, N), lambda i: (0, 0)),
                  pl.BlockSpec((1, N), lambda i: (0, 0))],
        out_specs=pl.BlockSpec((bm, N), lambda i: (i, 0)),
        out_shape=jax.ShapeDtypeStruct((M, N), out_dtype),
        compiler_params=_params("parallel"),
    )(x2, w, b)


def pallas_layernorm(x2, g, b, eps):
    M, D = x2.shape
    bm, gm = _row_tiles(M)
    return pl.pallas_call(
        partial(_ln_kernel, eps=eps),
        grid=(gm,),
        in_specs=[pl.BlockSpec((bm, D), lambda i: (i, 0)),
                  pl.BlockSpec((1, D), lambda i: (0, 0)),
                  pl.BlockSpec((1, D), lambda i: (0, 0))],
        out_specs=pl.BlockSpec((bm, D), lambda i: (i, 0)),
        out_shape=jax.ShapeDtypeStruct((M, D), jnp.float32),
        compiler_params=_params("parallel"),
    )(x2, g, b)


def pallas_ln_linear(x2, g, b, w, bias, eps, out_dtype=jnp.float32):
    M, D = x2.shape
    N = w.shape[1]
    bm, gm = _row_tiles(M)
    return pl.pallas_call(
        partial(_ln_linear_kernel, eps=eps),
        grid=(gm,),
        in_specs=[pl.BlockSpec((bm, D), lambda i: (i, 0)),
                  pl.BlockSpec((1, D), lambda i: (0, 0)),
                  pl.BlockSpec((1, D), lambda i: (0, 0)),
                  pl.BlockSpec((D, N), lambda i: (0, 0)),
                  pl.BlockSpec((1, N), lambda i: (0, 0))],
        out_specs=pl.BlockSpec((bm, N), lambda i: (i, 0)),
        out_shape=jax.ShapeDtypeStruct((M, N), out_dtype),
        compiler_params=_params("parallel"),
    )(x2, g, b, w, bias)


def pallas_ln_mlp_res(x2, g, b, w1, b1, w2, b2, eps):
    M, D = x2.shape
    H = w1.shape[1]
    bm, gm = _row_tiles(M)
    return pl.pallas_call(
        partial(_ln_mlp_res_kernel, eps=eps),
        grid=(gm,),
        in_specs=[pl.BlockSpec((bm, D), lambda i: (i, 0)),
                  pl.BlockSpec((1, D), lambda i: (0, 0)),
                  pl.BlockSpec((1, D), lambda i: (0, 0)),
                  pl.BlockSpec((D, H), lambda i: (0, 0)),
                  pl.BlockSpec((1, H), lambda i: (0, 0)),
                  pl.BlockSpec((H, D), lambda i: (0, 0)),
                  pl.BlockSpec((1, D), lambda i: (0, 0))],
        out_specs=pl.BlockSpec((bm, D), lambda i: (i, 0)),
        out_shape=jax.ShapeDtypeStruct((M, D), jnp.float32),
        compiler_params=_params("parallel"),
    )(x2, g, b, w1, b1, w2, b2)


def pallas_mlp(x2, w1, b1, w2, b2):
    M, D = x2.shape
    H = w1.shape[1]
    N = w2.shape[1]
    bm, gm = _row_tiles(M)
    return pl.pallas_call(
        _mlp_kernel,
        grid=(gm,),
        in_specs=[pl.BlockSpec((bm, D), lambda i: (i, 0)),
                  pl.BlockSpec((D, H), lambda i: (0, 0)),
                  pl.BlockSpec((1, H), lambda i: (0, 0)),
                  pl.BlockSpec((H, N), lambda i: (0, 0)),
                  pl.BlockSpec((1, N), lambda i: (0, 0))],
        out_specs=pl.BlockSpec((bm, N), lambda i: (i, 0)),
        out_shape=jax.ShapeDtypeStruct((M, N), jnp.float32),
        compiler_params=_params("parallel"),
    )(x2, w1, b1, w2, b2)


def pallas_patch_embed(patches, w, b, pos):
    """patches (B, L, C*p*p) @ w + b + pos  (pos-embed add fused)."""
    B, L, K = patches.shape
    D = w.shape[1]
    return pl.pallas_call(
        _patch_embed_kernel,
        grid=(B,),
        in_specs=[pl.BlockSpec((1, L, K), lambda i: (i, 0, 0)),
                  pl.BlockSpec((K, D), lambda i: (0, 0)),
                  pl.BlockSpec((1, D), lambda i: (0, 0)),
                  pl.BlockSpec((L, D), lambda i: (0, 0))],
        out_specs=pl.BlockSpec((1, L, D), lambda i: (i, 0, 0)),
        out_shape=jax.ShapeDtypeStruct((B, L, D), jnp.float32),
        compiler_params=_params("parallel"),
    )(patches, w, b, pos)


def pallas_attn_block(x, g, b, qkv_w, qkv_b, pw, pb, num_heads, eps):
    """Fused LN1 + QKV + all-heads attention + out-proj + residual, grid over batch."""
    B, N, D = x.shape
    scale = (D // num_heads) ** -0.5
    return pl.pallas_call(
        partial(_attn_block_kernel, num_heads=num_heads, scale=scale, eps=eps),
        grid=(B,),
        in_specs=[pl.BlockSpec((1, N, D), lambda i: (i, 0, 0)),
                  pl.BlockSpec((1, D), lambda i: (0, 0)),
                  pl.BlockSpec((1, D), lambda i: (0, 0)),
                  pl.BlockSpec((D, 3 * D), lambda i: (0, 0)),
                  pl.BlockSpec((1, 3 * D), lambda i: (0, 0)),
                  pl.BlockSpec((D, D), lambda i: (0, 0)),
                  pl.BlockSpec((1, D), lambda i: (0, 0))],
        out_specs=pl.BlockSpec((1, N, D), lambda i: (i, 0, 0)),
        out_shape=jax.ShapeDtypeStruct((B, N, D), jnp.float32),
        compiler_params=_params("parallel"),
    )(x, g, b, qkv_w, qkv_b, pw, pb)


def pallas_masked_mse(pred2, target2, mask2):
    """sum(mask * mean((pred-target)^2, -1)) / sum(mask), fully reduced in-kernel."""
    M, P = pred2.shape
    bm, gm = _row_tiles(M)
    num, den = pl.pallas_call(
        partial(_masked_mse_kernel, block_m=bm, n_rows=M),
        grid=(gm,),
        in_specs=[pl.BlockSpec((bm, P), lambda i: (i, 0)),
                  pl.BlockSpec((bm, P), lambda i: (i, 0)),
                  pl.BlockSpec((bm, 1), lambda i: (i, 0))],
        out_specs=[pl.BlockSpec((1, 1), lambda i: (0, 0)),
                   pl.BlockSpec((1, 1), lambda i: (0, 0))],
        out_shape=[jax.ShapeDtypeStruct((1, 1), jnp.float32),
                   jax.ShapeDtypeStruct((1, 1), jnp.float32)],
        compiler_params=_params("arbitrary"),
    )(pred2, target2, mask2)
    return num[0, 0] / den[0, 0]


# ------------------------- transformer building blocks ------------------------

def transformer_block(x, bp, num_heads, eps):
    B, N, D = x.shape
    x = pallas_attn_block(x, bp['norm1_g'], bp['norm1_b'],
                          bp['qkv_w'], bp['qkv_b'],
                          bp['proj_w'], bp['proj_b'], num_heads, eps)
    y = pallas_ln_mlp_res(x.reshape(B * N, D), bp['norm2_g'], bp['norm2_b'],
                          bp['fc1_w'], bp['fc1_b'], bp['fc2_w'], bp['fc2_b'], eps)
    return y.reshape(B, N, D)


def extract_patches(imgs, p):
    """Conv2d(kernel=stride=p) input rearrangement (im2col); matmul runs in Pallas."""
    B, C, H, W = imgs.shape
    gh, gw = H // p, W // p
    x = imgs.reshape(B, C, gh, p, gw, p).transpose(0, 2, 4, 1, 3, 5)
    return x.reshape(B, gh * gw, C * p * p)


def patchify(imgs, p):
    B, C, H, W = imgs.shape
    h = H // p
    x = imgs.reshape(B, C, h, p, h, p)
    x = jnp.einsum('nchpwq->nhwpqc', x)
    return x.reshape(B, h * h, p * p * C)


# --------------------------- positional embeddings ----------------------------

def _sincos_1d(embed_dim, pos):
    omega = np.arange(embed_dim // 2, dtype=np.float32) / (embed_dim / 2.0)
    omega = 1.0 / 10000 ** omega
    out = np.einsum('m,d->md', pos.reshape(-1), omega)
    return np.concatenate([np.sin(out), np.cos(out)], axis=1)


def get_2d_sincos_pos_embed(embed_dim, grid_size, cls_token=False):
    grid_h = np.arange(grid_size, dtype=np.float32)
    grid_w = np.arange(grid_size, dtype=np.float32)
    grid = np.meshgrid(grid_w, grid_h)  # w goes first (MAE reference impl)
    grid = np.stack(grid, axis=0).reshape([2, 1, grid_size, grid_size])
    emb_h = _sincos_1d(embed_dim // 2, grid[0])
    emb_w = _sincos_1d(embed_dim // 2, grid[1])
    pe = np.concatenate([emb_h, emb_w], axis=1)
    if cls_token:
        pe = np.concatenate([np.zeros([1, embed_dim], np.float32), pe], axis=0)
    return pe.astype(np.float32)


def build_moco_2d_sincos_pos_embed(embed_dim, h, w, temperature=10000.0):
    gw, gh = np.meshgrid(np.arange(w, dtype=np.float32),
                         np.arange(h, dtype=np.float32), indexing='ij')
    pos_dim = embed_dim // 4
    omega = np.arange(pos_dim, dtype=np.float32) / pos_dim
    omega = 1.0 / temperature ** omega
    out_w = np.einsum('m,d->md', gw.flatten(), omega)
    out_h = np.einsum('m,d->md', gh.flatten(), omega)
    pe = np.concatenate([np.sin(out_w), np.cos(out_w),
                         np.sin(out_h), np.cos(out_h)], axis=1)[None]
    return np.concatenate([np.zeros([1, 1, embed_dim], np.float32), pe],
                          axis=1).astype(np.float32)


# --------------------------------- DiffAugment --------------------------------
# Standard DiffAugment (Zhao et al.) 'color,translation,cutout' in JAX with a
# deterministic PRNG key (source of this function is external to the module).

def diff_augment(x, key):
    kb, ks, kc, kt1, kt2, ko1, ko2 = jax.random.split(key, 7)
    B, C, H, W = x.shape
    # color: brightness, saturation, contrast
    x = x + (jax.random.uniform(kb, (B, 1, 1, 1)) - 0.5)
    xm = x.mean(axis=1, keepdims=True)
    x = (x - xm) * (jax.random.uniform(ks, (B, 1, 1, 1)) * 2.0) + xm
    xm = x.mean(axis=(1, 2, 3), keepdims=True)
    x = (x - xm) * (jax.random.uniform(kc, (B, 1, 1, 1)) + 0.5) + xm
    # translation (ratio 0.125, zero padding)
    sx, sy = int(H * 0.125 + 0.5), int(W * 0.125 + 0.5)
    tx = jax.random.randint(kt1, (B, 1, 1), -sx, sx + 1)
    ty = jax.random.randint(kt2, (B, 1, 1), -sy, sy + 1)
    gb, gx, gy = jnp.meshgrid(jnp.arange(B), jnp.arange(H), jnp.arange(W), indexing='ij')
    gx = jnp.clip(gx + tx + 1, 0, H + 1)
    gy = jnp.clip(gy + ty + 1, 0, W + 1)
    x_pad = jnp.pad(x, ((0, 0), (0, 0), (1, 1), (1, 1)))
    x = jnp.transpose(jnp.transpose(x_pad, (0, 2, 3, 1))[gb, gx, gy], (0, 3, 1, 2))
    # cutout (ratio 0.5)
    ch, cw = int(H * 0.5 + 0.5), int(W * 0.5 + 0.5)
    ox = jax.random.randint(ko1, (B, 1, 1), 0, H + (1 - ch % 2))
    oy = jax.random.randint(ko2, (B, 1, 1), 0, W + (1 - cw % 2))
    gb, gx, gy = jnp.meshgrid(jnp.arange(B), jnp.arange(ch), jnp.arange(cw), indexing='ij')
    gx = jnp.clip(gx + ox - ch // 2, 0, H - 1)
    gy = jnp.clip(gy + oy - cw // 2, 0, W - 1)
    m = jnp.ones((B, H, W), x.dtype).at[gb, gx, gy].set(0)
    return x * m[:, None, :, :]


# ----------------------------------- MAE pieces --------------------------------

def random_masking(x, mask_ratio, key):
    N, L, D = x.shape
    len_keep = int(L * (1 - mask_ratio))
    noise = jax.random.uniform(key, (N, L))
    ids_shuffle = jnp.argsort(noise, axis=1)
    ids_restore = jnp.argsort(ids_shuffle, axis=1)
    ids_keep = ids_shuffle[:, :len_keep]
    x_masked = jnp.take_along_axis(x, ids_keep[:, :, None], axis=1)
    mask = jnp.ones((N, L), jnp.float32).at[:, :len_keep].set(0.0)
    mask = jnp.take_along_axis(mask, ids_restore, axis=1)
    return x_masked, mask, ids_restore


def mae_forward_encoder(p, cfg, imgs, mask_ratio, key):
    patches = extract_patches(imgs, cfg['patch_size'])
    # pos_embed[:, 1:, :] add fused into the patch-embed matmul kernel
    x = pallas_patch_embed(patches, p['patch_w'], p['patch_b'], p['pos_embed'][0, 1:, :])
    x, mask, ids_restore = random_masking(x, mask_ratio, key)
    cls = p['cls_token'] + p['pos_embed'][:, :1, :]
    cls = jnp.broadcast_to(cls, (x.shape[0], 1, x.shape[2]))
    x = jnp.concatenate([cls, x], axis=1)
    for bp in p['blocks']:
        x = transformer_block(x, bp, cfg['num_heads'], eps=1e-5)
    B, N, D = x.shape
    x = pallas_layernorm(x.reshape(B * N, D), p['norm_g'], p['norm_b'], 1e-5).reshape(B, N, D)
    return x, mask, ids_restore


def mae_forward_decoder(p, cfg, x, ids_restore):
    B, Nk, D = x.shape
    x = pallas_linear(x.reshape(B * Nk, D), p['dec_embed_w'], p['dec_embed_b'])
    Dd = x.shape[-1]
    x = x.reshape(B, Nk, Dd)
    L = ids_restore.shape[1]
    mask_tokens = jnp.broadcast_to(p['mask_token'], (B, L + 1 - Nk, Dd))
    x_ = jnp.concatenate([x[:, 1:, :], mask_tokens], axis=1)
    x_ = jnp.take_along_axis(x_, ids_restore[:, :, None], axis=1)
    x = jnp.concatenate([x[:, :1, :], x_], axis=1)
    x = x + p['dec_pos_embed']
    for bp in p['dec_blocks']:
        x = transformer_block(x, bp, cfg['decoder_num_heads'], eps=1e-5)
    B, N, Dd = x.shape
    # decoder norm + decoder pred fused into one LN->matmul kernel
    pred = pallas_ln_linear(x.reshape(B * N, Dd), p['dec_norm_g'], p['dec_norm_b'],
                            p['dec_pred_w'], p['dec_pred_b'], 1e-5)
    pred = pred.reshape(B, N, -1)
    return pred[:, 1:, :]


def mae_forward_loss(imgs, pred, mask, cfg):
    target = patchify(imgs, cfg['patch_size'])   # norm_pix_loss=False (default)
    B, L, P = target.shape
    return pallas_masked_mse(pred.reshape(B * L, P), target.reshape(B * L, P),
                             mask.reshape(B * L, 1))


def pro_forward_cls(p, latent):
    # Only the cls token feeds the cosine loss (target_token == 'cls_token').
    cls = latent[:, 0, :]                        # (B, D)
    return pallas_mlp(cls, p['fc1_w'], p['fc1_b'], p['fc2_w'], p['fc2_b'])


def moco_forward_cls(p, cfg, imgs):
    patches = extract_patches(imgs, cfg['patch_size'])
    # pos_embed[0, 1:] fused into the patch-embed kernel; pos[0] added to cls below
    x = pallas_patch_embed(patches, p['patch_w'], p['patch_b'], p['pos_embed'][0, 1:, :])
    B, L, Dm = x.shape
    cls = p['cls_token'] + p['pos_embed'][:, :1, :]
    cls = jnp.broadcast_to(cls, (B, 1, Dm))
    x = jnp.concatenate([cls, x], axis=1)        # pos_drop: drop_rate=0 -> identity
    for bp in p['blocks']:
        x = transformer_block(x, bp, cfg['moco_num_heads'], eps=1e-6)
    # only the cls token is consumed downstream -> LN the cls row only
    return pallas_layernorm(x[:, 0, :], p['norm_g'], p['norm_b'], 1e-6)


def model_forward(params, cfg, imgs, key, mask_ratio=0.75):
    k_aug, k_mask = jax.random.split(key)
    imgs = diff_augment(imgs, k_aug)

    latent, mask, ids_restore = mae_forward_encoder(params['mae'], cfg, imgs, mask_ratio, k_mask)
    pred = mae_forward_decoder(params['mae'], cfg, latent, ids_restore)
    loss_mae = mae_forward_loss(imgs, pred, mask, cfg)

    a = pro_forward_cls(params['pro'], latent)                               # (B, D)
    b = jax.lax.stop_gradient(moco_forward_cls(params['moco'], cfg, imgs))   # .detach()

    # target_token == 'cls_token', MoCo_loss_type == 'sim'
    num = jnp.sum(a * b, axis=-1)
    den = jnp.maximum(jnp.linalg.norm(a, axis=-1) * jnp.linalg.norm(b, axis=-1), 1e-8)
    loss_moco = jnp.mean(-(num / den))
    return loss_mae + loss_moco


# ------------------------------- parameter init --------------------------------

def xavier_uniform(key, shape):
    lim = math.sqrt(6.0 / (shape[0] + shape[1]))
    return jax.random.uniform(key, shape, jnp.float32, -lim, lim)


def init_block_params(key, dim, mlp_ratio):
    hidden = int(dim * mlp_ratio)
    ks = jax.random.split(key, 4)
    z = lambda n: jnp.zeros((1, n), jnp.float32)
    o = lambda n: jnp.ones((1, n), jnp.float32)
    wd = lambda k, s: xavier_uniform(k, s).astype(W_DTYPE)   # bf16 weights, stored once
    return dict(
        norm1_g=o(dim), norm1_b=z(dim),
        qkv_w=wd(ks[0], (dim, 3 * dim)), qkv_b=z(3 * dim),
        proj_w=wd(ks[1], (dim, dim)), proj_b=z(dim),
        norm2_g=o(dim), norm2_b=z(dim),
        fc1_w=wd(ks[2], (dim, hidden)), fc1_b=z(hidden),
        fc2_w=wd(ks[3], (hidden, dim)), fc2_b=z(dim),
    )


def init_params(key, cfg):
    p = cfg['patch_size']; C = cfg['in_chans']
    D = cfg['embed_dim']; Dd = cfg['decoder_embed_dim']; Dm = cfg['moco_embed_dim']
    grid = cfg['img_size'] // p
    z = lambda n: jnp.zeros((1, n), jnp.float32)
    o = lambda n: jnp.ones((1, n), jnp.float32)
    wd = lambda k, s: xavier_uniform(k, s).astype(W_DTYPE)
    keys = jax.random.split(key, 12)
    mae = dict(
        patch_w=wd(keys[0], (C * p * p, D)), patch_b=z(D),
        cls_token=0.02 * jax.random.normal(keys[1], (1, 1, D), jnp.float32),
        pos_embed=jnp.asarray(get_2d_sincos_pos_embed(D, grid, cls_token=True))[None],
        blocks=[init_block_params(k, D, cfg['mlp_ratio'])
                for k in jax.random.split(keys[2], cfg['depth'])],
        norm_g=o(D), norm_b=z(D),
        dec_embed_w=wd(keys[3], (D, Dd)), dec_embed_b=z(Dd),
        mask_token=0.02 * jax.random.normal(keys[4], (1, 1, Dd), jnp.float32),
        dec_pos_embed=jnp.asarray(get_2d_sincos_pos_embed(Dd, grid, cls_token=True))[None],
        dec_blocks=[init_block_params(k, Dd, cfg['mlp_ratio'])
                    for k in jax.random.split(keys[5], cfg['decoder_depth'])],
        dec_norm_g=o(Dd), dec_norm_b=z(Dd),
        dec_pred_w=wd(keys[6], (Dd, p * p * C)), dec_pred_b=z(p * p * C),
    )
    pro = dict(
        fc1_w=wd(keys[7], (D, D)), fc1_b=z(D),
        fc2_w=wd(keys[8], (D, D)), fc2_b=z(D),
    )
    moco = dict(
        patch_w=wd(keys[9], (C * p * p, Dm)), patch_b=z(Dm),
        cls_token=1e-6 * jax.random.normal(keys[10], (1, 1, Dm), jnp.float32),
        pos_embed=jnp.asarray(build_moco_2d_sincos_pos_embed(Dm, grid, grid)),
        blocks=[init_block_params(k, Dm, cfg['mlp_ratio'])
                for k in jax.random.split(keys[11], cfg['moco_depth'])],
        norm_g=o(Dm), norm_b=z(Dm),
    )
    return dict(mae=mae, pro=pro, moco=moco)


# ------------------------------------- main -------------------------------------

if __name__ == "__main__":
    # Small, shape-consistent config (original: img 224 / patch 16 / dims 768-1024).
    # MAE embed_dim must equal MoCo embed_dim for the cls-token cosine loss.
    cfg = dict(img_size=16, patch_size=4, in_chans=3,
               embed_dim=32, depth=2, num_heads=4,
               decoder_embed_dim=16, decoder_depth=1, decoder_num_heads=4,
               mlp_ratio=4.0,
               moco_embed_dim=32, moco_depth=2, moco_num_heads=4)

    root = jax.random.PRNGKey(0)
    k_params, k_imgs, k_fwd = jax.random.split(root, 3)

    params = init_params(k_params, cfg)
    imgs = jax.random.normal(k_imgs, (2, cfg['in_chans'], cfg['img_size'], cfg['img_size']),
                             jnp.float32)

    loss = model_forward(params, cfg, imgs, k_fwd, mask_ratio=0.75)
    loss = jax.block_until_ready(loss)
    assert jnp.isfinite(loss)
    print("KERNEL_OK")
</pallas_src>

<mosaic_0001>
module attributes {stable_mosaic.version = 11 : i64} {
  func.func @_patch_embed_kernel(%arg0: i32, %arg1: memref<1x16x48xf32, #tpu.memory_space<vmem>>, %arg2: memref<48x32xbf16, #tpu.memory_space<vmem>>, %arg3: memref<1x32xf32, #tpu.memory_space<vmem>>, %arg4: memref<16x32xf32, #tpu.memory_space<vmem>>, %arg5: memref<1x16x32xf32, #tpu.memory_space<vmem>>) attributes {dimension_semantics = [#tpu.dimension_semantics<parallel>], iteration_bounds = array<i64: 2>, scalar_prefetch = 0 : i64, scratch_operands = 0 : i64, tpu.core_type = #tpu.core_type<tc>, window_params = [{transform_indices = @transform_0, window_bounds = array<i64: 1, 16, 48>}, {pipeline_mode = #tpu.pipeline_mode<synchronous>, transform_indices = @transform_1, window_bounds = array<i64: 48, 32>}, {pipeline_mode = #tpu.pipeline_mode<synchronous>, transform_indices = @transform_2, window_bounds = array<i64: 1, 32>}, {pipeline_mode = #tpu.pipeline_mode<synchronous>, transform_indices = @transform_3, window_bounds = array<i64: 16, 32>}, {transform_indices = @transform_4, window_bounds = array<i64: 1, 16, 32>}]} {
    %c0 = arith.constant 0 : index
    %c0_0 = arith.constant 0 : index
    %c0_1 = arith.constant 0 : index
    %0 = vector.load %arg1[%c0, %c0_0, %c0_1] : memref<1x16x48xf32, #tpu.memory_space<vmem>>, vector<1x16x48xf32>
    %1 = vector.shape_cast %0 : vector<1x16x48xf32> to vector<16x48xf32>
    %2 = arith.truncf %1 : vector<16x48xf32> to vector<16x48xbf16>
    %c0_2 = arith.constant 0 : index
    %c0_3 = arith.constant 0 : index
    %3 = vector.load %arg2[%c0_2, %c0_3] : memref<48x32xbf16, #tpu.memory_space<vmem>>, vector<48x32xbf16>
    %cst = arith.constant dense<0.000000e+00> : vector<16x32xf32>
    %4 = tpu.matmul %2, %3, %cst {dimension_numbers = #tpu.dot_dimension_numbers<[1], [0], [0], [1], [0, 0, 1, 1], [], []>} : vector<16x48xbf16>, vector<48x32xbf16>, vector<16x32xf32> -> vector<16x32xf32>
    %c0_4 = arith.constant 0 : index
    %c0_5 = arith.constant 0 : index
    %5 = vector.load %arg3[%c0_4, %c0_5] : memref<1x32xf32, #tpu.memory_space<vmem>>, vector<1x32xf32>
    %6 = vector.broadcast %5 : vector<1x32xf32> to vector<16x32xf32>
    %7 = arith.addf %4, %6 : vector<16x32xf32>
    %c0_6 = arith.constant 0 : index
    %c0_7 = arith.constant 0 : index
    %8 = vector.load %arg4[%c0_6, %c0_7] : memref<16x32xf32, #tpu.memory_space<vmem>>, vector<16x32xf32>
    %9 = arith.addf %7, %8 : vector<16x32xf32>
    %c0_8 = arith.constant 0 : index
    %c0_9 = arith.constant 0 : index
    %c0_10 = arith.constant 0 : index
    %10 = vector.load %arg5[%c0_8, %c0_9, %c0_10] : memref<1x16x32xf32, #tpu.memory_space<vmem>>, vector<1x16x32xf32>
    %11 = vector.shape_cast %10 : vector<1x16x32xf32> to vector<16x32xf32>
    %12 = vector.shape_cast %9 : vector<16x32xf32> to vector<1x16x32xf32>
    tpu.vector_store %arg5[%c0_8, %c0_9, %c0_10], %12 {strides = array<i32>} : memref<1x16x32xf32, #tpu.memory_space<vmem>>, vector<1x16x32xf32>,
    return
  }
  func.func @transform_0(%arg0: i32) -> (i32, i32, i32) {
    %c0_i32 = arith.constant 0 : i32
    %c0_i32_0 = arith.constant 0 : i32
    %c0_i32_1 = arith.constant 0 : i32
    return %arg0, %c0_i32, %c0_i32_0 : i32, i32, i32
  }
  func.func @transform_1(%arg0: i32) -> (i32, i32) {
    %c0_i32 = arith.constant 0 : i32
    %c0_i32_0 = arith.constant 0 : i32
    %c0_i32_1 = arith.constant 0 : i32
    return %c0_i32, %c0_i32_0 : i32, i32
  }
  func.func @transform_2(%arg0: i32) -> (i32, i32) {
    %c0_i32 = arith.constant 0 : i32
    %c0_i32_0 = arith.constant 0 : i32
    %c0_i32_1 = arith.constant 0 : i32
    return %c0_i32, %c0_i32_0 : i32, i32
  }
  func.func @transform_3(%arg0: i32) -> (i32, i32) {
    %c0_i32 = arith.constant 0 : i32
    %c0_i32_0 = arith.constant 0 : i32
    %c0_i32_1 = arith.constant 0 : i32
    return %c0_i32, %c0_i32_0 : i32, i32
  }
  func.func @transform_4(%arg0: i32) -> (i32, i32, i32) {
    %c0_i32 = arith.constant 0 : i32
    %c0_i32_0 = arith.constant 0 : i32
    %c0_i32_1 = arith.constant 0 : i32
    return %arg0, %c0_i32, %c0_i32_0 : i32, i32, i32
  }
}

</mosaic_0001>

<llo_original>
// kernel: tpu_custom_call.1
$region0: #{tpu_custom_call.1}
  #allocation0 [shape = 'u32[]', space=smem, size = 0x4, offset = 0x4, fixed_abs, tag = 'smem constant byte address 0x4 - core index']
  #allocation1 [shape = 'u32[144,128]{1,0:T(1,128)}', space=vmem, size = 0x12000, scoped, tag = 'internal scratch']
  %s0 = inlined_call_operand.vmem [shape: f32[2,16,48], index: 0, kind: input, shape index: {}]
  %s1 = inlined_call_operand.vmem [shape: bf16[48,32], index: 1, kind: input, shape index: {}]
  %s2 = inlined_call_operand.vmem [shape: f32[1,32], index: 2, kind: input, shape index: {}]
  %s3 = inlined_call_operand.vmem [shape: f32[16,32], index: 3, kind: input, shape index: {}]
  %s4 = inlined_call_operand.hbm [shape: f32[2,16,32], index: 4, kind: output, shape index: {}]
  %s5 = sld [smem:[#allocation0]]
  $region49: #{tpu_custom_call.1} parent=0
    _
  %s7 = ssub.s32 1, %s5
  %s8 = scalar_select 0, %s7, %s5
  $region1: #{tpu_custom_call.1} parent=0
    #allocation2 [shape = 'u8[16384]{0}', space=vmem, size = 0x4000, scoped, tag = 'output window, operand 0']
    #allocation3 [shape = 's32[2]{0}', space=sflag, size = 0x8, scoped, tag = 'scoped memory for tpu_custom_call.1']
    %9 = vsyncpa [#allocation3], 0
    %s10 = scalar_lea.sflag [#allocation3], 1
    %11 = vsyncpa %s10, 0
    loop: start=0, step=1, limit=4
    $region2: #{tpu_custom_call.1} parent=1 // loop_pre_header
      _
    $region3: #{tpu_custom_call.1} parent=1 // loop_header
      %s13 = sphi 0, %s17
      %p14 = scmp.ge.s32.totalorder %s13, 4
      %s23 = sphi 0, %s25
      %s26 = sphi 0, %s23
      %s27 = sphi 0, %s26
      %s43 = sphi 0, %s27
      %s47 = sphi 0, %s47
      %s49 = sphi 0, %s47
      %s50 = sphi 0, %s49
      %s64 = sphi 0, %s50
      %s68 = sphi 0, %s68
      %s70 = sphi 0, %s68
      %s71 = sphi 0, %s70
      %s85 = sphi 0, %s71
      %s89 = sphi 0, %s89
      %s91 = sphi 0, %s89
      %s92 = sphi 0, %s91
      %s106 = sphi 0, %s92
      %s112 = sphi 0, %s114
      %s115 = sphi 0, %s112
      %s116 = sphi 0, %s115
      %s132 = sphi 0, %s116
    $region4: #{tpu_custom_call.1} parent=1 // loop_header_branch
      %16 = sbr.rel (%p14) target = $region8
    $region5: #{tpu_custom_call.1} parent=1 // loop_body
      %s18 = ssub.s32 %s13, 1
      %s19 = ssub.s32 %s13, 2
      %s20 = sadd.s32 %s13, 1
      %s21 = ssub.s32 %s13, %s20
      %p22 = scmp.eq.s32.totalorder %s21, 0
      %s24 = sadd.s32 %s23, 1
      %s25 = scalar_select %p22, %s23, %s24
      %p28 = pneg %p22
      %p29 = scmp.eq.s32.totalorder %s13, 1
      %p30 = por %p28, %p29
      %p31 = scmp.ne.s32.totalorder %s23, %s26
      %p32 = scmp.eq.s32.totalorder %s13, 0
      %p33 = por %p31, %p32
      %p34 = scmp.ne.s32.totalorder %s23, %s26
      %p35 = scmp.eq.s32.totalorder %s18, 1
      %p36 = por %p34, %p35
      %p37 = scmp.ne.s32.totalorder %s26, %s27
      %p38 = scmp.eq.s32.totalorder %s18, 0
      %p39 = por %p37, %p38
      %p40 = scmp.ne.s32.totalorder %s26, %s27
      %p41 = scmp.eq.s32.totalorder %s19, 1
      %p42 = por %p40, %p41
      %p44 = scmp.ne.s32.totalorder %s27, %s43
      %p45 = scmp.eq.s32.totalorder %s19, 0
      %p46 = por %p44, %p45
      %s48 = sadd.s32 %s47, 1
      %p51 = scmp.eq.s32.totalorder %s13, 1
      %p52 = scmp.ne.s32.totalorder %s47, %s49
      %p53 = scmp.eq.s32.totalorder %s13, 0
      %p54 = por %p52, %p53
      %p55 = scmp.ne.s32.totalorder %s47, %s49
      %p56 = scmp.eq.s32.totalorder %s18, 1
      %p57 = por %p55, %p56
      %p58 = scmp.ne.s32.totalorder %s49, %s50
      %p59 = scmp.eq.s32.totalorder %s18, 0
      %p60 = por %p58, %p59
      %p61 = scmp.ne.s32.totalorder %s49, %s50
      %p62 = scmp.eq.s32.totalorder %s19, 1
      %p63 = por %p61, %p62
      %p65 = scmp.ne.s32.totalorder %s50, %s64
      %p66 = scmp.eq.s32.totalorder %s19, 0
      %p67 = por %p65, %p66
      %s69 = sadd.s32 %s68, 1
      %p72 = scmp.eq.s32.totalorder %s13, 1
      %p73 = scmp.ne.s32.totalorder %s68, %s70
      %p74 = scmp.eq.s32.totalorder %s13, 0
      %p75 = por %p73, %p74
      %p76 = scmp.ne.s32.totalorder %s68, %s70
      %p77 = scmp.eq.s32.totalorder %s18, 1
      %p78 = por %p76, %p77
      %p79 = scmp.ne.s32.totalorder %s70, %s71
      %p80 = scmp.eq.s32.totalorder %s18, 0
      %p81 = por %p79, %p80
      %p82 = scmp.ne.s32.totalorder %s70, %s71
      %p83 = scmp.eq.s32.totalorder %s19, 1
      %p84 = por %p82, %p83
      %p86 = scmp.ne.s32.totalorder %s71, %s85
      %p87 = scmp.eq.s32.totalorder %s19, 0
      %p88 = por %p86, %p87
      %s90 = sadd.s32 %s89, 1
      %p93 = scmp.eq.s32.totalorder %s13, 1
      %p94 = scmp.ne.s32.totalorder %s89, %s91
      %p95 = scmp.eq.s32.totalorder %s13, 0
      %p96 = por %p94, %p95
      %p97 = scmp.ne.s32.totalorder %s89, %s91
      %p98 = scmp.eq.s32.totalorder %s18, 1
      %p99 = por %p97, %p98
      %p100 = scmp.ne.s32.totalorder %s91, %s92
      %p101 = scmp.eq.s32.totalorder %s18, 0
      %p102 = por %p100, %p101
      %p103 = scmp.ne.s32.totalorder %s91, %s92
      %p104 = scmp.eq.s32.totalorder %s19, 1
      %p105 = por %p103, %p104
      %p107 = scmp.ne.s32.totalorder %s92, %s106
      %p108 = scmp.eq.s32.totalorder %s19, 0
      %p109 = por %p107, %p108
      %s110 = ssub.s32 %s13, %s20
      %p111 = scmp.eq.s32.totalorder %s110, 0
      %s113 = sadd.s32 %s112, 1
      %s114 = scalar_select %p111, %s112, %s113
      %p117 = pneg %p111
      %p118 = scmp.eq.s32.totalorder %s13, 1
      %p119 = por %p117, %p118
      %p120 = scmp.ne.s32.totalorder %s112, %s115
      %p121 = scmp.eq.s32.totalorder %s13, 0
      %p122 = por %p120, %p121
      %p123 = scmp.ne.s32.totalorder %s112, %s115
      %p124 = scmp.eq.s32.totalorder %s18, 1
      %p125 = por %p123, %p124
      %p126 = scmp.ne.s32.totalorder %s115, %s116
      %p127 = scmp.eq.s32.totalorder %s18, 0
      %p128 = por %p126, %p127
      %p129 = scmp.ne.s32.totalorder %s115, %s116
      %p130 = scmp.eq.s32.totalorder %s19, 1
      %p131 = por %p129, %p130
      %p133 = scmp.ne.s32.totalorder %s116, %s132
      %p134 = scmp.eq.s32.totalorder %s19, 0
      %p135 = por %p133, %p134
      %p136 = scmp.le.s32.totalorder 1, %s13
      %p137 = scmp.lt.s32.totalorder %s13, 3
      %p138 = pnand %p136, %p137
      %p139 = pneg %p138
      // Predicated region
      $region9: #{tpu_custom_call.1} parent=5 // pred_check
        _
      $region10: #{tpu_custom_call.1} parent=5 // pred_check_branch
        %141 = sbr.rel (%p138) target = $region12
      $region11: #{tpu_custom_call.1} parent=5 // pred_region
        %s142 = ssub.s32 %s13, 1
        // Predicated region
        $region13: #{tpu_custom_call.1} parent=11 // pred_check
          %p143 = pneg %p60
        $region14: #{tpu_custom_call.1} parent=11 // pred_check_branch
          %145 = sbr.rel (%p143) target = $region16
        $region15: #{tpu_custom_call.1} parent=11 // pred_region
          _
        $region16: #{tpu_custom_call.1} parent=11 // pred_fallthru
          _
        // Predicated region
        $region17: #{tpu_custom_call.1} parent=11 // pred_check
          %p146 = pneg %p81
        $region18: #{tpu_custom_call.1} parent=11 // pred_check_branch
          %148 = sbr.rel (%p146) target = $region20
        $region19: #{tpu_custom_call.1} parent=11 // pred_region
          _
        $region20: #{tpu_custom_call.1} parent=11 // pred_fallthru
          _
        // Predicated region
        $region21: #{tpu_custom_call.1} parent=11 // pred_check
          %p149 = pneg %p102
        $region22: #{tpu_custom_call.1} parent=11 // pred_check_branch
          %151 = sbr.rel (%p149) target = $region24
        $region23: #{tpu_custom_call.1} parent=11 // pred_region
          _
        $region24: #{tpu_custom_call.1} parent=11 // pred_fallthru
          _
      $region12: #{tpu_custom_call.1} parent=5 // pred_fallthru
        _
      %p152 = scmp.lt.s32.totalorder %s13, 2
      // Predicated region
      $region25: #{tpu_custom_call.1} parent=5 // pred_check
        %p153 = pneg %p152
      $region26: #{tpu_custom_call.1} parent=5 // pred_check_branch
        %155 = sbr.rel (%p153) target = $region28
      $region27: #{tpu_custom_call.1} parent=5 // pred_region
        // Predicated region
        $region29: #{tpu_custom_call.1} parent=27 // pred_check
          %p156 = pneg %p33
        $region30: #{tpu_custom_call.1} parent=27 // pred_check_branch
          %158 = sbr.rel (%p156) target = $region32
        $region31: #{tpu_custom_call.1} parent=27 // pred_region
          %p159 = scmp.lt.s32.totalorder %s13, 1
          %s160 = scalar_select %p159, %s13, 1
          %s161 = smul.addr %s160, 2
          %s162 = smul.addr %s161, 8
          %s163 = scalar_lea.vmem %s0, %s162
        $region32: #{tpu_custom_call.1} parent=27 // pred_fallthru
          _
      $region28: #{tpu_custom_call.1} parent=5 // pred_fallthru
        _
      %p164 = scmp.le.s32.totalorder 1, %s13
      %p165 = scmp.lt.s32.totalorder %s13, 3
      %p166 = pnand %p164, %p165
      %p167 = pneg %p166
      // Predicated region
      $region33: #{tpu_custom_call.1} parent=5 // pred_check
        _
      $region34: #{tpu_custom_call.1} parent=5 // pred_check_branch
        %169 = sbr.rel (%p166) target = $region36
      $region35: #{tpu_custom_call.1} parent=5 // pred_region
        %s170 = ssub.s32 %s13, 1
        %p171 = scmp.lt.s32.totalorder %s18, 1
        %s172 = scalar_select %p171, %s18, 1
        %s173 = smul.addr %s172, 2
        %s174 = smul.addr %s173, 8
        %s175 = scalar_lea.vmem %s0, %s174
        %p176 = pneg %p39
        %p177 = pneg %p36
        %p178 = pneg %p60
        %p179 = pneg %p57
        %p180 = pneg %p81
        %p181 = pneg %p78
        %p182 = pneg %p102
        %p183 = pneg %p99
        %p184 = pneg %p128
        %p185 = pneg %p125
        %s186 = sand.u32 %s115, 1
        %s187 = scalar_lea.sflag [#allocation3], %s186
        %s188 = sand.u32 %s115, 1
        %s189 = smul.addr %s188, 16
        %s190 = scalar_lea.vmem [#allocation2], %s189
        %p191 = scmp.lt.s32.totalorder %s18, 1
        %s192 = scalar_select %p191, %s18, 1
        %s193 = smul.addr %s192, 2
        %s194 = smul.addr %s193, 8
        %s195 = scalar_lea.vmem %s0, %s194
        %v197 = vld [vmem:[%s195] sm:$0xff]
        %v198 = vld [vmem:[%s195 + $0x8] sm:$0xff]
        %v199 = vpack.c.bf16 %v198, %v197
        %v200 = vld [vmem:[%s1] sm:$0xf]
        %v201 = vld [vmem:[%s1 + $0x4] sm:$0xf]
        %v202 = vld [vmem:[%s1 + $0x8] sm:$0xf]
        %v203 = vld [vmem:[%s1 + $0xc] sm:$0xf]
        %v204 = vld [vmem:[%s1 + $0x10] sm:$0xf]
        %v205 = vld [vmem:[%s1 + $0x14] sm:$0xf]
        %v206 = vld [vmem:[%s2] sm:$0x1]
        %v208 = vlaneseq
        %v209 = vshrl.u32 %v208, 7
        %v210 = vsub.s32 0, %v209
        %v211 = vrot.slane %v206, %v210
        %v219 = vunpack.c.l.b16 %v200
        %v220 = vunpack.c.l.b16 %v201
        %v221 = vunpack.c.l.b16 %v202
        %v222 = vunpack.c.l.b16 %v203
        %v223 = vunpack.c.l.b16 %v204
        %v224 = vunpack.c.l.b16 %v205
        %v225 = vpack.c.b16 %v220, %v219
        %v226 = vpack.c.b16 %v222, %v221
        %v227 = vpack.c.b16 %v224, %v223
        %vm231 = vcmask 392192
        %v233 = vsel %vm231, %v199, 0
        %235 = vmatprep.subr.bf16.mxu0 0
        %236 = vmatpush1.bf16.msra.mxu0 %v225
        %237 = vmatprep.subr.bf16.mxu0 0
        %238 = vmatpush1.bf16.msra.mxu0 %v226
        %239 = vmatprep.subr.bf16.mxu0 0
        %240 = vmatpush1.bf16.msra.mxu0 %v227
        %241 = vmatprep.subr.bf16.mxu0 0
        %242 = vmatpush1.bf16.msra.mxu0 0
        %243 = vmatprep.subr.bf16.mxu0 0
        %244 = vmatpush1.bf16.msra.mxu0 0
        %245 = vmatprep.subr.bf16.mxu0 0
        %246 = vmatpush1.bf16.msra.mxu0 0
        %247 = vmatprep.subr.bf16.mxu0 0
        %248 = vmatpush1.bf16.msra.mxu0 0
        %249 = vmatprep.subr.bf16.mxu0 0
        %250 = vmatpush1.bf16.msra.mxu0 0
        %251 = vmatprep.subr.bf16.mxu0 0
        %252 = vmatpush1.bf16.msra.mxu0 0
        %253 = vmatprep.subr.bf16.mxu0 0
        %254 = vmatpush1.bf16.msra.mxu0 0
        %255 = vmatprep.subr.bf16.mxu0 0
        %256 = vmatpush1.bf16.msra.mxu0 0
        %257 = vmatprep.subr.bf16.mxu0 0
        %258 = vmatpush1.bf16.msra.mxu0 0
        %259 = vmatprep.subr.bf16.mxu0 0
        %260 = vmatpush1.bf16.msra.mxu0 0
        %261 = vmatprep.subr.bf16.mxu0 0
        %262 = vmatpush1.bf16.msra.mxu0 0
        %263 = vmatprep.subr.bf16.mxu0 0
        %264 = vmatpush1.bf16.msra.mxu0 0
        %265 = vmatprep.subr.bf16.mxu0 0
        %266 = vmatpush1.bf16.msra.mxu0 0
        %267 = vmatprep.mubr.bf16.mxu0 0
        %268 = vmatmul.mubr.bf16.gmra.mrb[0].mxu0 %v233
        %v269 = vpop.f32.mrb[0].mxu0
        %v270 = vadd.f32 %v211, %v269
        %v271 = vpop.f32.mrb[0].mxu0
        %v272 = vpop.f32.mrb[0].mxu0
        %v273 = vadd.f32 %v211, %v272
        %v274 = vpop.f32.mrb[0].mxu0
        %275 = vdwg.mxu0
        %v276 = vld [vmem:[%s3] sm:$0xff]
        %v277 = vld [vmem:[%s3 + $0x8] sm:$0xff]
        %v278 = vadd.f32 %v270, %v276
        %v279 = vadd.f32 %v273, %v277
        %vm280 = vcmask 261120
        %281 = vst.msk [vmem:[%s190] sm:$0xff] %vm280, %v278
        %282 = vst.msk [vmem:[%s190 + $0x8] sm:$0xff] %vm280, %v279
        %s283 = sand.u32 %s115, 1
        %s284 = scalar_lea.sflag [#allocation3], %s283
        %s285 = sand.u32 %s115, 1
        %s286 = smul.addr %s285, 16
        %s287 = scalar_lea.vmem [#allocation2], %s286
        // Predicated region
        $region37: #{tpu_custom_call.1} parent=35 // pred_check
          %p288 = pneg %p125
        $region38: #{tpu_custom_call.1} parent=35 // pred_check_branch
          %290 = sbr.rel (%p288) target = $region40
        $region39: #{tpu_custom_call.1} parent=35 // pred_region
          %s292 = ssub.s32 256, 256
          %293 = vsyncadd %s284, %s292
          %s294 = smul.addr %s18, 2
          %s295 = smul.addr %s294, 128
          %s296 = scalar_lea.hbm %s4, %s295
          %s297 = sshll.u32 %s287, 4
          %s298 = int_to_ptr.vmem [resolvable:$true] %s297
          %303 = dma.vmem_to_hbm [thread:$0]  %s298, 256, %s296, %s284, 128, 128, 8
        $region40: #{tpu_custom_call.1} parent=35 // pred_fallthru
          _
      $region36: #{tpu_custom_call.1} parent=5 // pred_fallthru
        _
      %p304 = scmp.le.s32.totalorder 2, %s13
      // Predicated region
      $region41: #{tpu_custom_call.1} parent=5 // pred_check
        %p305 = pneg %p304
      $region42: #{tpu_custom_call.1} parent=5 // pred_check_branch
        %307 = sbr.rel (%p305) target = $region44
      $region43: #{tpu_custom_call.1} parent=5 // pred_region
        %s308 = ssub.s32 %s13, 2
        // Predicated region
        $region45: #{tpu_custom_call.1} parent=43 // pred_check
          %p309 = pneg %p131
        $region46: #{tpu_custom_call.1} parent=43 // pred_check_branch
          %311 = sbr.rel (%p309) target = $region48
        $region47: #{tpu_custom_call.1} parent=43 // pred_region
          %s312 = sand.u32 %s116, 1
          %s313 = scalar_lea.sflag [#allocation3], %s312
          %s314 = sand.u32 %s116, 1
          %s315 = smul.addr %s314, 16
          %s316 = scalar_lea.vmem [#allocation2], %s315
          %317 = dma.done %s313, 256
        $region48: #{tpu_custom_call.1} parent=43 // pred_fallthru
          _
      $region44: #{tpu_custom_call.1} parent=5 // pred_fallthru
        _
    $region6: #{tpu_custom_call.1} parent=1 // loop_footer
      %s17 = sadd.s32 1, %s13
    $region7: #{tpu_custom_call.1} parent=1 // loop_footer_branch
      %12 = sbr.rel target = $region3
    $region8: #{tpu_custom_call.1} parent=1 // loop_exit
      _
    %318 = vsyncpa [#allocation3], 1
    %s319 = scalar_lea.sflag [#allocation3], 1
    %320 = vsyncpa %s319, 1

</llo_original>
